<compile_context>
chip_gen: v7x
topology: tpu7x:2x2x1
jax: 0.10.0
libtpu: 0.0.40
codegen_flags: <defaults>
</compile_context>

<pallas_src>
import functools

import jax
import jax.numpy as jnp
from jax import lax
from jax.experimental import pallas as pl
from jax.experimental.pallas import tpu as pltpu


# ----------------------------------------------------------------------------
# Kernel 1: fused attention2d + dynamic-weight aggregation
# ----------------------------------------------------------------------------
def _fused_attention_kernel(x_ref, w1_ref, w2t_ref, b2_ref, wflat_ref, kbias_ref,
                            invt_ref, attn_ref, aggw_ref, aggb_ref, pooled_acc,
                            *, inv_hw):
    # x_ref:     (B_tile, C, HW_tile)   w1_ref:  (hidden, C)   w2t_ref: (hidden, K)
    # b2_ref:    (1, K)                 wflat:   (K, C*ks*ks)  kbias:   (K, C)
    # invt_ref:  (1, 1) SMEM scalar = 1/temperature
    hw_step = pl.program_id(1)

    @pl.when(hw_step == 0)
    def _():
        pooled_acc[...] = jnp.zeros_like(pooled_acc)

    # AdaptiveAvgPool2d(1): accumulate the spatial sum of this HW tile (f32 acc).
    pooled_acc[...] += jnp.sum(x_ref[...].astype(jnp.float32), axis=-1)   # (B_tile, C)

    @pl.when(hw_step == pl.num_programs(1) - 1)
    def _():
        hidden = w1_ref.shape[0]
        K = w2t_ref.shape[1]

        pooled = pooled_acc[...] * inv_hw                                  # mean as a multiply

        # fc1 (+ReLU) and fc2 on the VPU: hidden/K are tiny, an MXU matmul
        # would be massively underfilled.  (Switch to jnp.dot for large hidden*K.)
        logits = jnp.zeros((pooled.shape[0], K), jnp.float32) + b2_ref[...]
        for j in range(hidden):                                            # unrolled, static
            hj = jnp.sum(pooled * w1_ref[j:j + 1, :], axis=-1, keepdims=True)   # (B_tile, 1)
            hj = jnp.maximum(hj, 0.0)
            logits = logits + hj * w2t_ref[j:j + 1, :]                          # (B_tile, K)

        # softmax(logits / temperature): both divides turned into multiplies;
        # the reciprocal goes to the (idle) EUP slot.
        logits = logits * invt_ref[0, 0]
        m = jnp.max(logits, axis=-1, keepdims=True)
        e = jnp.exp(logits - m)
        attn = e * pl.reciprocal(jnp.sum(e, axis=-1, keepdims=True), approx=True)
        attn_ref[...] = attn.astype(attn_ref.dtype)

        # Fused aggregation: attn @ weight.view(K,-1) and attn @ bias (K tiny -> VPU).
        aggw = jnp.zeros(aggw_ref.shape, jnp.float32)
        aggb = jnp.zeros(aggb_ref.shape, jnp.float32)
        for k in range(K):                                                 # unrolled, static
            a_k = attn[:, k:k + 1]                                         # (B_tile, 1)
            aggw = aggw + a_k * wflat_ref[k:k + 1, :]                      # (B_tile, C*ks*ks)
            aggb = aggb + a_k * kbias_ref[k:k + 1, :]                      # (B_tile, C)
        aggw_ref[...] = aggw.astype(aggw_ref.dtype)
        aggb_ref[...] = aggb.astype(aggb_ref.dtype)


def _pick_hw_tile(hw, b_tile, c, cap_bytes=8 << 20):
    """HW tile: multiple of 128 lanes; 2x(double-buffer) x tile stays under cap (v7x-safe)."""
    if hw % 128 != 0:
        return hw                                   # fall back to one full block
    lanes = max(128, (cap_bytes // (2 * b_tile * c * 4)) // 128 * 128)
    t = int(min(hw, lanes))
    while hw % t:
        t -= 128
    return t


def dynamic_branch_attention(x, fc1_w, fc2_w, fc2_b, kernel_weight, kernel_bias,
                             temperature, *, hw_tile=None):
    """attention2d + aggregation for one branch.

    Returns (attn (B,K), aggregate_weight (B, C*ks*ks), aggregate_bias (B, C)).
    """
    B, C, H, W = x.shape
    hidden = fc1_w.shape[0]
    K = fc2_w.shape[0]
    HW = H * W

    x3 = x.reshape(B, C, HW)
    w2t = jnp.transpose(fc2_w)                       # one-time host-side transpose -> (hidden, K)
    b2 = fc2_b.reshape(1, K)
    wflat = kernel_weight.reshape(K, -1)             # (K, C*ks*ks)
    D = wflat.shape[1]
    inv_temp = (1.0 / jnp.asarray(temperature, jnp.float32)).reshape(1, 1)

    b_tile = B if B % 8 else min(B, 8)               # keep (b_tile, K/D/C) out-blocks legal
    if hw_tile is None:
        hw_tile = _pick_hw_tile(HW, b_tile, C)
    grid = (B // b_tile, HW // hw_tile)

    kernel = functools.partial(_fused_attention_kernel, inv_hw=1.0 / float(HW))

    return pl.pallas_call(
        kernel,
        out_shape=(
            jax.ShapeDtypeStruct((B, K), jnp.float32),
            jax.ShapeDtypeStruct((B, D), jnp.float32),
            jax.ShapeDtypeStruct((B, C), jnp.float32),
        ),
        grid=grid,
        in_specs=[
            pl.BlockSpec((b_tile, C, hw_tile), lambda b, h: (b, 0, h)),
            pl.BlockSpec((hidden, C), lambda b, h: (0, 0)),
            pl.BlockSpec((hidden, K), lambda b, h: (0, 0)),
            pl.BlockSpec((1, K), lambda b, h: (0, 0)),
            pl.BlockSpec((K, D), lambda b, h: (0, 0)),
            pl.BlockSpec((K, C), lambda b, h: (0, 0)),
            pl.BlockSpec((1, 1), lambda b, h: (0, 0), memory_space=pltpu.SMEM),
        ],
        out_specs=(
            pl.BlockSpec((b_tile, K), lambda b, h: (b, 0)),
            pl.BlockSpec((b_tile, D), lambda b, h: (b, 0)),
            pl.BlockSpec((b_tile, C), lambda b, h: (b, 0)),
        ),
        scratch_shapes=[pltpu.VMEM((b_tile, C), jnp.float32)],
        compiler_params=pltpu.CompilerParams(
            dimension_semantics=("parallel", "arbitrary"),
            vmem_limit_bytes=32 * 1024 * 1024,
        ),
    )(x3, fc1_w, w2t, b2, wflat, kernel_bias, inv_temp)


# ----------------------------------------------------------------------------
# Kernel 2: per-sample depthwise dynamic conv (groups = B * C, 'same' padding)
# ----------------------------------------------------------------------------
def _dyn_depthwise_conv_kernel(xp_ref, w_ref, b_ref, o_ref, *, ks, H, W):
    # xp_ref: (b_tile, Hp, Wp, C)  padded NHWC input    (C on lanes)
    # w_ref:  (b_tile, ks*ks, C)   per-sample depthwise taps
    # b_ref:  (b_tile, 1, C)       per-sample per-channel bias
    # o_ref:  (b_tile, H, W, C)
    acc = jnp.zeros(o_ref.shape, jnp.float32)
    for dy in range(ks):                                        # unrolled, static taps
        for dx in range(ks):
            # Shifted VMEM view: only sublane / leading-dim offsets, lanes untouched.
            tap = xp_ref[:, dy:dy + H, dx:dx + W, :].astype(jnp.float32)   # (bt, H, W, C)
            idx = dy * ks + dx
            wk = w_ref[:, idx:idx + 1, :]                                  # (bt, 1, C)
            acc = acc + tap * wk[:, :, None, :]                            # FMA on VPU
    acc = acc + b_ref[...][:, :, None, :]                                  # (bt,1,1,C) bcast
    o_ref[...] = acc.astype(o_ref.dtype)


def dynamic_depthwise_conv(x, aggw, aggb, ks, *, b_tile=1):
    """F.conv2d(x.reshape(1,B*C,H,W), aggw.view(B*C,1,ks,ks), aggb, padding=ks//2,
    groups=B*C) rendered as a Pallas kernel (per-sample depthwise conv)."""
    B, C, H, W = x.shape
    pad = ks // 2

    # Host-side layout plumbing: NHWC (C on lanes) + spatial zero padding.
    x_nhwc = jnp.transpose(x, (0, 2, 3, 1))
    xp = jnp.pad(x_nhwc, ((0, 0), (pad, pad), (pad, pad), (0, 0)))
    Hp, Wp = H + 2 * pad, W + 2 * pad

    # aggw is laid out (c, ky, kx) per row -> (B, ks*ks, C) so C ends up on lanes.
    w = aggw.reshape(B, C, ks, ks)
    w = jnp.transpose(w, (0, 2, 3, 1)).reshape(B, ks * ks, C)
    b3 = aggb.reshape(B, 1, C)

    if B % b_tile:
        b_tile = 1
    grid = (B // b_tile,)

    kernel = functools.partial(_dyn_depthwise_conv_kernel, ks=ks, H=H, W=W)

    out_nhwc = pl.pallas_call(
        kernel,
        out_shape=jax.ShapeDtypeStruct((B, H, W, C), x.dtype),
        grid=grid,
        in_specs=[
            pl.BlockSpec((b_tile, Hp, Wp, C), lambda b: (b, 0, 0, 0)),
            pl.BlockSpec((b_tile, ks * ks, C), lambda b: (b, 0, 0)),
            pl.BlockSpec((b_tile, 1, C), lambda b: (b, 0, 0)),
        ],
        out_specs=pl.BlockSpec((b_tile, H, W, C), lambda b: (b, 0, 0, 0)),
        compiler_params=pltpu.CompilerParams(
            dimension_semantics=("parallel",),
        ),
    )(xp, w, b3)
    return jnp.transpose(out_nhwc, (0, 3, 1, 2))


def dynamic_branch_forward(x, fc1_w, fc2_w, fc2_b, kernel_weight, kernel_bias,
                           temperature, *, hw_tile=None):
    """One full dynamic-conv branch: attention2d -> aggregation -> depthwise conv."""
    ks = kernel_weight.shape[-1]
    attn, aggw, aggb = dynamic_branch_attention(
        x, fc1_w, fc2_w, fc2_b, kernel_weight, kernel_bias, temperature, hw_tile=hw_tile)
    out = dynamic_depthwise_conv(x, aggw, aggb, ks)
    return attn, aggw, aggb, out


# ----------------------------------------------------------------------------
# Pure-JAX reference (matches the PyTorch branch semantics)
# ----------------------------------------------------------------------------
def _reference_branch(x, fc1_w, fc2_w, fc2_b, kernel_weight, kernel_bias, temperature):
    B, C, H, W = x.shape
    K = fc2_w.shape[0]
    ks = kernel_weight.shape[-1]
    pad = ks // 2
    pooled = jnp.mean(x, axis=(2, 3))                              # (B, C)
    h = jnp.maximum(pooled @ fc1_w.T, 0.0)                         # (B, hidden)
    logits = h @ fc2_w.T + fc2_b[None, :]                          # (B, K)
    attn = jax.nn.softmax(logits / temperature, axis=1)
    aggw = attn @ kernel_weight.reshape(K, -1)                     # (B, C*ks*ks)
    aggb = attn @ kernel_bias                                      # (B, C)
    w = aggw.reshape(B * C, 1, ks, ks)
    out = lax.conv_general_dilated(
        x.reshape(1, B * C, H, W), w, window_strides=(1, 1),
        padding=[(pad, pad), (pad, pad)],
        dimension_numbers=('NCHW', 'OIHW', 'NCHW'),
        feature_group_count=B * C)
    out = out.reshape(B, C, H, W) + aggb.reshape(B, C, 1, 1)
    return attn, aggw, aggb, out


if __name__ == "__main__":
    # Shapes consistent with Dynamic_conv2dMultiKernel(in_planes=4, K=2, kernel_size=3).
    B, C, H, W = 2, 4, 16, 16
    K = 2
    temperature = 4.0                              # annealed value; satisfies temperature % 3 == 1
    hidden = (C // 8) + 1 if C != 3 else K         # attention2d hidden_planes -> 1
    base_ks = 3

    key = jax.random.PRNGKey(0)
    keys = jax.random.split(key, 16)
    x = jax.random.normal(keys[0], (B, C, H, W), dtype=jnp.float32)

    ok = True
    for i, ks in enumerate((base_ks, base_ks + 2, base_ks + 4)):   # weight1/2/3 branches
        k0 = 1 + 5 * i
        fc1_w = jax.random.normal(keys[k0 + 0], (hidden, C), jnp.float32) * jnp.sqrt(2.0 / hidden)
        fc2_w = jax.random.normal(keys[k0 + 1], (K, hidden), jnp.float32) * jnp.sqrt(2.0 / K)
        fc2_b = jax.random.normal(keys[k0 + 2], (K,), jnp.float32) * 0.1
        wk = jax.random.normal(keys[k0 + 3], (K, C, 1, ks, ks), jnp.float32)
        bk = jax.random.normal(keys[k0 + 4], (K, C), jnp.float32)

        attn, aggw, aggb, out = dynamic_branch_forward(
            x, fc1_w, fc2_w, fc2_b, wk, bk, jnp.float32(temperature),
            hw_tile=128)  # 128-lane tiles -> exercises the pipelined HW reduction
        attn, aggw, aggb, out = jax.block_until_ready((attn, aggw, aggb, out))

        attn_r, aggw_r, aggb_r, out_r = _reference_branch(
            x, fc1_w, fc2_w, fc2_b, wk, bk, temperature)

        # Tolerances include headroom for the EUP approximate reciprocal (~2^-12 rel).
        ok &= bool(jnp.allclose(attn, attn_r, rtol=5e-3, atol=1e-4))
        ok &= bool(jnp.allclose(aggw, aggw_r, rtol=5e-3, atol=5e-3))
        ok &= bool(jnp.allclose(aggb, aggb_r, rtol=5e-3, atol=5e-3))
        ok &= bool(jnp.allclose(out, out_r, rtol=5e-3, atol=2e-2))

    assert ok
    print("KERNEL_OK")
</pallas_src>

<mosaic_0001>
module attributes {stable_mosaic.version = 11 : i64} {
  func.func @_fused_attention_kernel(%arg0: i32, %arg1: i32, %arg2: memref<2x4x128xf32, #tpu.memory_space<vmem>>, %arg3: memref<1x4xf32, #tpu.memory_space<vmem>>, %arg4: memref<1x2xf32, #tpu.memory_space<vmem>>, %arg5: memref<1x2xf32, #tpu.memory_space<vmem>>, %arg6: memref<2x36xf32, #tpu.memory_space<vmem>>, %arg7: memref<2x4xf32, #tpu.memory_space<vmem>>, %arg8: memref<1x1xf32, #tpu.memory_space<smem>>, %arg9: memref<2x2xf32, #tpu.memory_space<vmem>>, %arg10: memref<2x36xf32, #tpu.memory_space<vmem>>, %arg11: memref<2x4xf32, #tpu.memory_space<vmem>>, %arg12: memref<2x4xf32, #tpu.memory_space<vmem>>) attributes {dimension_semantics = [#tpu.dimension_semantics<parallel>, #tpu.dimension_semantics<arbitrary>], iteration_bounds = array<i64: 1, 2>, scalar_prefetch = 0 : i64, scratch_operands = 1 : i64, tpu.core_type = #tpu.core_type<tc>, window_params = [{transform_indices = @transform_0, window_bounds = array<i64: 2, 4, 128>}, {pipeline_mode = #tpu.pipeline_mode<synchronous>, transform_indices = @transform_1, window_bounds = array<i64: 1, 4>}, {pipeline_mode = #tpu.pipeline_mode<synchronous>, transform_indices = @transform_2, window_bounds = array<i64: 1, 2>}, {pipeline_mode = #tpu.pipeline_mode<synchronous>, transform_indices = @transform_3, window_bounds = array<i64: 1, 2>}, {pipeline_mode = #tpu.pipeline_mode<synchronous>, transform_indices = @transform_4, window_bounds = array<i64: 2, 36>}, {pipeline_mode = #tpu.pipeline_mode<synchronous>, transform_indices = @transform_5, window_bounds = array<i64: 2, 4>}, {transform_indices = @transform_6, window_bounds = array<i64: 1, 1>}, {transform_indices = @transform_7, window_bounds = array<i64: 2, 2>}, {transform_indices = @transform_8, window_bounds = array<i64: 2, 36>}, {transform_indices = @transform_9, window_bounds = array<i64: 2, 4>}]} {
    %c0_i32 = arith.constant 0 : i32
    %0 = arith.cmpi eq, %arg1, %c0_i32 : i32
    %1 = arith.extui %0 : i1 to i32
    %c0_i32_0 = arith.constant 0 : i32
    %2 = arith.cmpi ne, %1, %c0_i32_0 : i32
    scf.if %2 {
      %cst_8 = arith.constant 0.000000e+00 : f32
      %11 = vector.broadcast %cst_8 : f32 to vector<2x4xf32>
      %c0_9 = arith.constant 0 : index
      %c0_10 = arith.constant 0 : index
      %12 = vector.load %arg12[%c0_9, %c0_10] : memref<2x4xf32, #tpu.memory_space<vmem>>, vector<2x4xf32>
      tpu.vector_store %arg12[%c0_9, %c0_10], %11 {strides = array<i32>} : memref<2x4xf32, #tpu.memory_space<vmem>>, vector<2x4xf32>,
    } else {
    }
    %c0 = arith.constant 0 : index
    %c0_1 = arith.constant 0 : index
    %3 = vector.load %arg12[%c0, %c0_1] : memref<2x4xf32, #tpu.memory_space<vmem>>, vector<2x4xf32>
    %c0_2 = arith.constant 0 : index
    %c0_3 = arith.constant 0 : index
    %c0_4 = arith.constant 0 : index
    %4 = vector.load %arg2[%c0_2, %c0_3, %c0_4] : memref<2x4x128xf32, #tpu.memory_space<vmem>>, vector<2x4x128xf32>
    %cst = arith.constant dense<0.000000e+00> : vector<2x4xf32>
    %5 = vector.multi_reduction <add>, %4, %cst [2] : vector<2x4x128xf32> to vector<2x4xf32>
    %6 = arith.addf %3, %5 : vector<2x4xf32>
    %c0_5 = arith.constant 0 : index
    %c0_6 = arith.constant 0 : index
    %7 = vector.load %arg12[%c0_5, %c0_6] : memref<2x4xf32, #tpu.memory_space<vmem>>, vector<2x4xf32>
    tpu.vector_store %arg12[%c0_5, %c0_6], %6 {strides = array<i32>} : memref<2x4xf32, #tpu.memory_space<vmem>>, vector<2x4xf32>,
    %c1_i32 = arith.constant 1 : i32
    %8 = arith.cmpi eq, %arg1, %c1_i32 : i32
    %9 = arith.extui %8 : i1 to i32
    %c0_i32_7 = arith.constant 0 : i32
    %10 = arith.cmpi ne, %9, %c0_i32_7 : i32
    scf.if %10 {
      %c0_8 = arith.constant 0 : index
      %c0_9 = arith.constant 0 : index
      %11 = vector.load %arg12[%c0_8, %c0_9] : memref<2x4xf32, #tpu.memory_space<vmem>>, vector<2x4xf32>
      %cst_10 = arith.constant 3.906250e-03 : f32
      %12 = vector.broadcast %cst_10 : f32 to vector<2x4xf32>
      %13 = arith.mulf %11, %12 : vector<2x4xf32>
      %cst_11 = arith.constant 0.000000e+00 : f32
      %14 = vector.broadcast %cst_11 : f32 to vector<2x2xf32>
      %c0_12 = arith.constant 0 : index
      %c0_13 = arith.constant 0 : index
      %15 = vector.load %arg5[%c0_12, %c0_13] : memref<1x2xf32, #tpu.memory_space<vmem>>, vector<1x2xf32>
      %16 = vector.broadcast %15 : vector<1x2xf32> to vector<2x2xf32>
      %17 = arith.addf %14, %16 : vector<2x2xf32>
      %c0_14 = arith.constant 0 : index
      %c0_15 = arith.constant 0 : index
      %18 = vector.load %arg3[%c0_14, %c0_15] : memref<1x4xf32, #tpu.memory_space<vmem>>, vector<1x4xf32>
      %19 = vector.broadcast %18 : vector<1x4xf32> to vector<2x4xf32>
      %20 = arith.mulf %13, %19 : vector<2x4xf32>
      %cst_16 = arith.constant dense<0.000000e+00> : vector<2xf32>
      %21 = vector.multi_reduction <add>, %20, %cst_16 [1] : vector<2x4xf32> to vector<2xf32>
      %22 = vector.shape_cast %21 : vector<2xf32> to vector<2x1xf32>
      %cst_17 = arith.constant 0.000000e+00 : f32
      %23 = vector.broadcast %cst_17 : f32 to vector<2x1xf32>
      %24 = arith.maximumf %22, %23 : vector<2x1xf32>
      %c0_18 = arith.constant 0 : index
      %c0_19 = arith.constant 0 : index
      %25 = vector.load %arg4[%c0_18, %c0_19] : memref<1x2xf32, #tpu.memory_space<vmem>>, vector<1x2xf32>
      %26 = vector.broadcast %24 : vector<2x1xf32> to vector<2x2xf32>
      %27 = vector.broadcast %25 : vector<1x2xf32> to vector<2x2xf32>
      %28 = arith.mulf %26, %27 : vector<2x2xf32>
      %29 = arith.addf %17, %28 : vector<2x2xf32>
      %c0_20 = arith.constant 0 : index
      %c0_21 = arith.constant 0 : index
      %30 = memref.load %arg8[%c0_20, %c0_21] : memref<1x1xf32, #tpu.memory_space<smem>>
      %31 = vector.broadcast %30 : f32 to vector<2x2xf32>
      %32 = arith.mulf %29, %31 : vector<2x2xf32>
      %cst_22 = arith.constant dense<0xFF800000> : vector<2xf32>
      %33 = vector.multi_reduction <maximumf>, %32, %cst_22 [1] : vector<2x2xf32> to vector<2xf32>
      %34 = vector.shape_cast %33 : vector<2xf32> to vector<2x1xf32>
      %35 = vector.broadcast %34 : vector<2x1xf32> to vector<2x2xf32>
      %36 = arith.subf %32, %35 : vector<2x2xf32>
      %37 = math.exp %36 : vector<2x2xf32>
      %cst_23 = arith.constant dense<0.000000e+00> : vector<2xf32>
      %38 = vector.multi_reduction <add>, %37, %cst_23 [1] : vector<2x2xf32> to vector<2xf32>
      %39 = vector.shape_cast %38 : vector<2xf32> to vector<2x1xf32>
      %40 = tpu.reciprocal %39 {approx = true} : vector<2x1xf32> -> vector<2x1xf32>
      %41 = vector.broadcast %40 : vector<2x1xf32> to vector<2x2xf32>
      %42 = arith.mulf %37, %41 : vector<2x2xf32>
      %c0_24 = arith.constant 0 : index
      %c0_25 = arith.constant 0 : index
      %43 = vector.load %arg9[%c0_24, %c0_25] : memref<2x2xf32, #tpu.memory_space<vmem>>, vector<2x2xf32>
      tpu.vector_store %arg9[%c0_24, %c0_25], %42 {strides = array<i32>} : memref<2x2xf32, #tpu.memory_space<vmem>>, vector<2x2xf32>,
      %cst_26 = arith.constant 0.000000e+00 : f32
      %44 = vector.broadcast %cst_26 : f32 to vector<2x36xf32>
      %cst_27 = arith.constant 0.000000e+00 : f32
      %45 = vector.broadcast %cst_27 : f32 to vector<2x4xf32>
      %46 = vector.extract_strided_slice %42 {offsets = [0, 0], sizes = [2, 1], strides = [1, 1]} : vector<2x2xf32> to vector<2x1xf32>
      %c0_28 = arith.constant 0 : index
      %c0_29 = arith.constant 0 : index
      %47 = vector.load %arg6[%c0_28, %c0_29] : memref<2x36xf32, #tpu.memory_space<vmem>>, vector<1x36xf32>
      %48 = vector.broadcast %46 : vector<2x1xf32> to vector<2x36xf32>
      %49 = vector.broadcast %47 : vector<1x36xf32> to vector<2x36xf32>
      %50 = arith.mulf %48, %49 : vector<2x36xf32>
      %51 = arith.addf %44, %50 : vector<2x36xf32>
      %c0_30 = arith.constant 0 : index
      %c0_31 = arith.constant 0 : index
      %52 = vector.load %arg7[%c0_30, %c0_31] : memref<2x4xf32, #tpu.memory_space<vmem>>, vector<1x4xf32>
      %53 = vector.broadcast %46 : vector<2x1xf32> to vector<2x4xf32>
      %54 = vector.broadcast %52 : vector<1x4xf32> to vector<2x4xf32>
      %55 = arith.mulf %53, %54 : vector<2x4xf32>
      %56 = arith.addf %45, %55 : vector<2x4xf32>
      %57 = vector.extract_strided_slice %42 {offsets = [0, 1], sizes = [2, 1], strides = [1, 1]} : vector<2x2xf32> to vector<2x1xf32>
      %c1 = arith.constant 1 : index
      %c0_32 = arith.constant 0 : index
      %58 = vector.load %arg6[%c1, %c0_32] : memref<2x36xf32, #tpu.memory_space<vmem>>, vector<1x36xf32>
      %59 = vector.broadcast %57 : vector<2x1xf32> to vector<2x36xf32>
      %60 = vector.broadcast %58 : vector<1x36xf32> to vector<2x36xf32>
      %61 = arith.mulf %59, %60 : vector<2x36xf32>
      %62 = arith.addf %51, %61 : vector<2x36xf32>
      %c1_33 = arith.constant 1 : index
      %c0_34 = arith.constant 0 : index
      %63 = vector.load %arg7[%c1_33, %c0_34] : memref<2x4xf32, #tpu.memory_space<vmem>>, vector<1x4xf32>
      %64 = vector.broadcast %57 : vector<2x1xf32> to vector<2x4xf32>
      %65 = vector.broadcast %63 : vector<1x4xf32> to vector<2x4xf32>
      %66 = arith.mulf %64, %65 : vector<2x4xf32>
      %67 = arith.addf %56, %66 : vector<2x4xf32>
      %c0_35 = arith.constant 0 : index
      %c0_36 = arith.constant 0 : index
      %68 = vector.load %arg10[%c0_35, %c0_36] : memref<2x36xf32, #tpu.memory_space<vmem>>, vector<2x36xf32>
      tpu.vector_store %arg10[%c0_35, %c0_36], %62 {strides = array<i32>} : memref<2x36xf32, #tpu.memory_space<vmem>>, vector<2x36xf32>,
      %c0_37 = arith.constant 0 : index
      %c0_38 = arith.constant 0 : index
      %69 = vector.load %arg11[%c0_37, %c0_38] : memref<2x4xf32, #tpu.memory_space<vmem>>, vector<2x4xf32>
      tpu.vector_store %arg11[%c0_37, %c0_38], %67 {strides = array<i32>} : memref<2x4xf32, #tpu.memory_space<vmem>>, vector<2x4xf32>,
    } else {
    }
    return
  }
  func.func @transform_0(%arg0: i32, %arg1: i32) -> (i32, i32, i32) {
    %c0_i32 = arith.constant 0 : i32
    %c0_i32_0 = arith.constant 0 : i32
    return %arg0, %c0_i32, %arg1 : i32, i32, i32
  }
  func.func @transform_1(%arg0: i32, %arg1: i32) -> (i32, i32) {
    %c0_i32 = arith.constant 0 : i32
    %c0_i32_0 = arith.constant 0 : i32
    %c0_i32_1 = arith.constant 0 : i32
    return %c0_i32, %c0_i32_0 : i32, i32
  }
  func.func @transform_2(%arg0: i32, %arg1: i32) -> (i32, i32) {
    %c0_i32 = arith.constant 0 : i32
    %c0_i32_0 = arith.constant 0 : i32
    %c0_i32_1 = arith.constant 0 : i32
    return %c0_i32, %c0_i32_0 : i32, i32
  }
  func.func @transform_3(%arg0: i32, %arg1: i32) -> (i32, i32) {
    %c0_i32 = arith.constant 0 : i32
    %c0_i32_0 = arith.constant 0 : i32
    %c0_i32_1 = arith.constant 0 : i32
    return %c0_i32, %c0_i32_0 : i32, i32
  }
  func.func @transform_4(%arg0: i32, %arg1: i32) -> (i32, i32) {
    %c0_i32 = arith.constant 0 : i32
    %c0_i32_0 = arith.constant 0 : i32
    %c0_i32_1 = arith.constant 0 : i32
    return %c0_i32, %c0_i32_0 : i32, i32
  }
  func.func @transform_5(%arg0: i32, %arg1: i32) -> (i32, i32) {
    %c0_i32 = arith.constant 0 : i32
    %c0_i32_0 = arith.constant 0 : i32
    %c0_i32_1 = arith.constant 0 : i32
    return %c0_i32, %c0_i32_0 : i32, i32
  }
  func.func @transform_6(%arg0: i32, %arg1: i32) -> (i32, i32) {
    %c0_i32 = arith.constant 0 : i32
    %c0_i32_0 = arith.constant 0 : i32
    %c0_i32_1 = arith.constant 0 : i32
    return %c0_i32, %c0_i32_0 : i32, i32
  }
  func.func @transform_7(%arg0: i32, %arg1: i32) -> (i32, i32) {
    %c0_i32 = arith.constant 0 : i32
    %c0_i32_0 = arith.constant 0 : i32
    return %arg0, %c0_i32 : i32, i32
  }
  func.func @transform_8(%arg0: i32, %arg1: i32) -> (i32, i32) {
    %c0_i32 = arith.constant 0 : i32
    %c0_i32_0 = arith.constant 0 : i32
    return %arg0, %c0_i32 : i32, i32
  }
  func.func @transform_9(%arg0: i32, %arg1: i32) -> (i32, i32) {
    %c0_i32 = arith.constant 0 : i32
    %c0_i32_0 = arith.constant 0 : i32
    return %arg0, %c0_i32 : i32, i32
  }
}

</mosaic_0001>

<llo_original>
// kernel: tpu_custom_call.1
$region0: #{tpu_custom_call.1}
  #allocation0 [shape = 'u32[]', space=smem, size = 0x4, offset = 0x4, fixed_abs, tag = 'smem constant byte address 0x4 - core index']
  #allocation1 [shape = 'u32[144,128]{1,0:T(1,128)}', space=vmem, size = 0x12000, scoped, tag = 'internal scratch']
  #allocation2 [shape = 'f32[2,4]{1,0:T(2,128)}', space=vmem, size = 0x400, scoped, tag = 'scratch operand']
  #allocation3 [shape = 'f32[1,1]{1,0:T(1,128)S(6)}', space=smem, size = 0x200, scoped, tag = 'scoped memory for tpu_custom_call.1']
  %s0 = inlined_call_operand.hbm [shape: f32[2,4,256], index: 0, kind: input, shape index: {}]
  %s1 = inlined_call_operand.vmem [shape: f32[1,4], index: 1, kind: input, shape index: {}]
  %s2 = inlined_call_operand.vmem [shape: f32[1,2], index: 2, kind: input, shape index: {}]
  %s3 = inlined_call_operand.vmem [shape: f32[1,2], index: 3, kind: input, shape index: {}]
  %s4 = inlined_call_operand.vmem [shape: f32[2,36], index: 4, kind: input, shape index: {}]
  %s5 = inlined_call_operand.vmem [shape: f32[2,4], index: 5, kind: input, shape index: {}]
  %s6 = inlined_call_operand.<no memory space> [shape: f32[1,1], index: 6, kind: input, shape index: {}]
  %s7 = inlined_call_operand.hbm [shape: f32[2,2], index: 7, kind: output, shape index: {0}]
  %s8 = inlined_call_operand.hbm [shape: f32[2,36], index: 8, kind: output, shape index: {1}]
  %s9 = inlined_call_operand.hbm [shape: f32[2,4], index: 9, kind: output, shape index: {2}]
  %10 = xla_tuple %s7, %s8, %s9
  %s11 = sld [smem:[#allocation0]]
  $region89: #{tpu_custom_call.1} parent=0
    _
  %s13 = ssub.s32 1, %s11
  %s14 = scalar_select 0, %s13, %s11
  %15 = sst [smem:[#allocation3]] %s6
  $region1: #{tpu_custom_call.1} parent=0
    #allocation4 [shape = 'u8[8192]{0}', space=vmem, size = 0x2000, scoped, tag = 'input window, operand 0']
    #allocation5 [shape = 's32[2]{0}', space=sflag, size = 0x8, scoped, tag = 'scoped memory for tpu_custom_call.1']
    #allocation6 [shape = 's32[2]{0}', space=sflag, size = 0x8, scoped, tag = 'scoped memory for tpu_custom_call.1']
    #allocation7 [shape = 'u8[1024]{0}', space=vmem, size = 0x400, scoped, tag = 'output window, operand 0, single buffered']
    #allocation8 [shape = 'u8[1024]{0}', space=vmem, size = 0x400, scoped, tag = 'output window, operand 1, single buffered']
    #allocation9 [shape = 's32[1]{0}', space=sflag, size = 0x4, scoped, tag = 'scoped memory for tpu_custom_call.1']
    #allocation10 [shape = 'u8[1024]{0}', space=vmem, size = 0x400, scoped, tag = 'output window, operand 2, single buffered']
    %16 = vsyncpa [#allocation5], 0
    %s17 = scalar_lea.sflag [#allocation5], 1
    %18 = vsyncpa %s17, 0
    %19 = vsyncpa [#allocation6], 0
    %20 = vsyncpa [#allocation9], 0
    loop: start=0, step=1, limit=4
    $region2: #{tpu_custom_call.1} parent=1 // loop_pre_header
      _
    $region3: #{tpu_custom_call.1} parent=1 // loop_header
      %s22 = sphi 0, %s26
      %p23 = scmp.ge.s32.totalorder %s22, 4
      %s29 = sphi 0, %s41
      %s30 = sphi 0, %s37
      %s31 = sphi 0, %s29
      %s32 = sphi 0, %s30
      %s33 = sphi 0, %s31
      %s34 = sphi 0, %s32
      %s46 = sphi 0, %s48
      %s49 = sphi 0, %s46
      %s50 = sphi 0, %s49
      %s66 = sphi 0, %s50
      %s70 = sphi 0, %s70
      %s72 = sphi 0, %s70
      %s73 = sphi 0, %s72
      %s87 = sphi 0, %s73
      %s91 = sphi 0, %s91
      %s93 = sphi 0, %s91
      %s94 = sphi 0, %s93
      %s108 = sphi 0, %s94
      %s112 = sphi 0, %s112
      %s114 = sphi 0, %s112
      %s115 = sphi 0, %s114
      %s129 = sphi 0, %s115
      %s133 = sphi 0, %s133
      %s135 = sphi 0, %s133
      %s136 = sphi 0, %s135
      %s150 = sphi 0, %s136
      %s154 = sphi 0, %s154
      %s156 = sphi 0, %s154
      %s157 = sphi 0, %s156
      %s171 = sphi 0, %s157
      %s175 = sphi 0, %s175
      %s177 = sphi 0, %s175
      %s178 = sphi 0, %s177
      %s192 = sphi 0, %s178
      %s198 = sphi 0, %s200
      %s201 = sphi 0, %s198
      %s202 = sphi 0, %s201
      %s218 = sphi 0, %s202
      %s224 = sphi 0, %s226
      %s227 = sphi 0, %s224
      %s228 = sphi 0, %s227
      %s244 = sphi 0, %s228
      %s250 = sphi 0, %s252
      %s253 = sphi 0, %s250
      %s254 = sphi 0, %s253
      %s270 = sphi 0, %s254
    $region4: #{tpu_custom_call.1} parent=1 // loop_header_branch
      %25 = sbr.rel (%p23) target = $region8
    $region5: #{tpu_custom_call.1} parent=1 // loop_body
      %s27 = ssub.s32 %s22, 1
      %s28 = ssub.s32 %s22, 2
      %s35 = sadd.s32 1, %s30
      %p36 = scmp.ge.s32.totalorder %s35, 2
      %s37 = scalar_select %p36, 0, %s35
      %s38 = sadd.s32 1, %s29
      %s39 = scalar_select %p36, %s38, %s29
      %p40 = scmp.ge.s32.totalorder %s39, 1
      %s41 = scalar_select %p40, 0, %s39
      %s42 = ssub.s32 %s29, %s41
      %s43 = ssub.s32 %s30, %s37
      %s44 = sor.u32 %s42, %s43
      %p45 = scmp.eq.s32.totalorder %s44, 0
      %s47 = sadd.s32 %s46, 1
      %s48 = scalar_select %p45, %s46, %s47
      %p51 = pneg %p45
      %p52 = scmp.eq.s32.totalorder %s22, 1
      %p53 = por %p51, %p52
      %p54 = scmp.ne.s32.totalorder %s46, %s49
      %p55 = scmp.eq.s32.totalorder %s22, 0
      %p56 = por %p54, %p55
      %p57 = scmp.ne.s32.totalorder %s46, %s49
      %p58 = scmp.eq.s32.totalorder %s27, 1
      %p59 = por %p57, %p58
      %p60 = scmp.ne.s32.totalorder %s49, %s50
      %p61 = scmp.eq.s32.totalorder %s27, 0
      %p62 = por %p60, %p61
      %p63 = scmp.ne.s32.totalorder %s49, %s50
      %p64 = scmp.eq.s32.totalorder %s28, 1
      %p65 = por %p63, %p64
      %p67 = scmp.ne.s32.totalorder %s50, %s66
      %p68 = scmp.eq.s32.totalorder %s28, 0
      %p69 = por %p67, %p68
      %s71 = sadd.s32 %s70, 1
      %p74 = scmp.eq.s32.totalorder %s22, 1
      %p75 = scmp.ne.s32.totalorder %s70, %s72
      %p76 = scmp.eq.s32.totalorder %s22, 0
      %p77 = por %p75, %p76
      %p78 = scmp.ne.s32.totalorder %s70, %s72
      %p79 = scmp.eq.s32.totalorder %s27, 1
      %p80 = por %p78, %p79
      %p81 = scmp.ne.s32.totalorder %s72, %s73
      %p82 = scmp.eq.s32.totalorder %s27, 0
      %p83 = por %p81, %p82
      %p84 = scmp.ne.s32.totalorder %s72, %s73
      %p85 = scmp.eq.s32.totalorder %s28, 1
      %p86 = por %p84, %p85
      %p88 = scmp.ne.s32.totalorder %s73, %s87
      %p89 = scmp.eq.s32.totalorder %s28, 0
      %p90 = por %p88, %p89
      %s92 = sadd.s32 %s91, 1
      %p95 = scmp.eq.s32.totalorder %s22, 1
      %p96 = scmp.ne.s32.totalorder %s91, %s93
      %p97 = scmp.eq.s32.totalorder %s22, 0
      %p98 = por %p96, %p97
      %p99 = scmp.ne.s32.totalorder %s91, %s93
      %p100 = scmp.eq.s32.totalorder %s27, 1
      %p101 = por %p99, %p100
      %p102 = scmp.ne.s32.totalorder %s93, %s94
      %p103 = scmp.eq.s32.totalorder %s27, 0
      %p104 = por %p102, %p103
      %p105 = scmp.ne.s32.totalorder %s93, %s94
      %p106 = scmp.eq.s32.totalorder %s28, 1
      %p107 = por %p105, %p106
      %p109 = scmp.ne.s32.totalorder %s94, %s108
      %p110 = scmp.eq.s32.totalorder %s28, 0
      %p111 = por %p109, %p110
      %s113 = sadd.s32 %s112, 1
      %p116 = scmp.eq.s32.totalorder %s22, 1
      %p117 = scmp.ne.s32.totalorder %s112, %s114
      %p118 = scmp.eq.s32.totalorder %s22, 0
      %p119 = por %p117, %p118
      %p120 = scmp.ne.s32.totalorder %s112, %s114
      %p121 = scmp.eq.s32.totalorder %s27, 1
      %p122 = por %p120, %p121
      %p123 = scmp.ne.s32.totalorder %s114, %s115
      %p124 = scmp.eq.s32.totalorder %s27, 0
      %p125 = por %p123, %p124
      %p126 = scmp.ne.s32.totalorder %s114, %s115
      %p127 = scmp.eq.s32.totalorder %s28, 1
      %p128 = por %p126, %p127
      %p130 = scmp.ne.s32.totalorder %s115, %s129
      %p131 = scmp.eq.s32.totalorder %s28, 0
      %p132 = por %p130, %p131
      %s134 = sadd.s32 %s133, 1
      %p137 = scmp.eq.s32.totalorder %s22, 1
      %p138 = scmp.ne.s32.totalorder %s133, %s135
      %p139 = scmp.eq.s32.totalorder %s22, 0
      %p140 = por %p138, %p139
      %p141 = scmp.ne.s32.totalorder %s133, %s135
      %p142 = scmp.eq.s32.totalorder %s27, 1
      %p143 = por %p141, %p142
      %p144 = scmp.ne.s32.totalorder %s135, %s136
      %p145 = scmp.eq.s32.totalorder %s27, 0
      %p146 = por %p144, %p145
      %p147 = scmp.ne.s32.totalorder %s135, %s136
      %p148 = scmp.eq.s32.totalorder %s28, 1
      %p149 = por %p147, %p148
      %p151 = scmp.ne.s32.totalorder %s136, %s150
      %p152 = scmp.eq.s32.totalorder %s28, 0
      %p153 = por %p151, %p152
      %s155 = sadd.s32 %s154, 1
      %p158 = scmp.eq.s32.totalorder %s22, 1
      %p159 = scmp.ne.s32.totalorder %s154, %s156
      %p160 = scmp.eq.s32.totalorder %s22, 0
      %p161 = por %p159, %p160
      %p162 = scmp.ne.s32.totalorder %s154, %s156
      %p163 = scmp.eq.s32.totalorder %s27, 1
      %p164 = por %p162, %p163
      %p165 = scmp.ne.s32.totalorder %s156, %s157
      %p166 = scmp.eq.s32.totalorder %s27, 0
      %p167 = por %p165, %p166
      %p168 = scmp.ne.s32.totalorder %s156, %s157
      %p169 = scmp.eq.s32.totalorder %s28, 1
      %p170 = por %p168, %p169
      %p172 = scmp.ne.s32.totalorder %s157, %s171
      %p173 = scmp.eq.s32.totalorder %s28, 0
      %p174 = por %p172, %p173
      %s176 = sadd.s32 %s175, 1
      %p179 = scmp.eq.s32.totalorder %s22, 1
      %p180 = scmp.ne.s32.totalorder %s175, %s177
      %p181 = scmp.eq.s32.totalorder %s22, 0
      %p182 = por %p180, %p181
      %p183 = scmp.ne.s32.totalorder %s175, %s177
      %p184 = scmp.eq.s32.totalorder %s27, 1
      %p185 = por %p183, %p184
      %p186 = scmp.ne.s32.totalorder %s177, %s178
      %p187 = scmp.eq.s32.totalorder %s27, 0
      %p188 = por %p186, %p187
      %p189 = scmp.ne.s32.totalorder %s177, %s178
      %p190 = scmp.eq.s32.totalorder %s28, 1
      %p191 = por %p189, %p190
      %p193 = scmp.ne.s32.totalorder %s178, %s192
      %p194 = scmp.eq.s32.totalorder %s28, 0
      %p195 = por %p193, %p194
      %s196 = ssub.s32 %s29, %s41
      %p197 = scmp.eq.s32.totalorder %s196, 0
      %s199 = sadd.s32 %s198, 1
      %s200 = scalar_select %p197, %s198, %s199
      %p203 = pneg %p197
      %p204 = scmp.eq.s32.totalorder %s22, 1
      %p205 = por %p203, %p204
      %p206 = scmp.ne.s32.totalorder %s198, %s201
      %p207 = scmp.eq.s32.totalorder %s22, 0
      %p208 = por %p206, %p207
      %p209 = scmp.ne.s32.totalorder %s198, %s201
      %p210 = scmp.eq.s32.totalorder %s27, 1
      %p211 = por %p209, %p210
      %p212 = scmp.ne.s32.totalorder %s201, %s202
      %p213 = scmp.eq.s32.totalorder %s27, 0
      %p214 = por %p212, %p213
      %p215 = scmp.ne.s32.totalorder %s201, %s202
      %p216 = scmp.eq.s32.totalorder %s28, 1
      %p217 = por %p215, %p216
      %p219 = scmp.ne.s32.totalorder %s202, %s218
      %p220 = scmp.eq.s32.totalorder %s28, 0
      %p221 = por %p219, %p220
      %s222 = ssub.s32 %s29, %s41
      %p223 = scmp.eq.s32.totalorder %s222, 0
      %s225 = sadd.s32 %s224, 1
      %s226 = scalar_select %p223, %s224, %s225
      %p229 = pneg %p223
      %p230 = scmp.eq.s32.totalorder %s22, 1
      %p231 = por %p229, %p230
      %p232 = scmp.ne.s32.totalorder %s224, %s227
      %p233 = scmp.eq.s32.totalorder %s22, 0
      %p234 = por %p232, %p233
      %p235 = scmp.ne.s32.totalorder %s224, %s227
      %p236 = scmp.eq.s32.totalorder %s27, 1
      %p237 = por %p235, %p236
      %p238 = scmp.ne.s32.totalorder %s227, %s228
      %p239 = scmp.eq.s32.totalorder %s27, 0
      %p240 = por %p238, %p239
      %p241 = scmp.ne.s32.totalorder %s227, %s228
      %p242 = scmp.eq.s32.totalorder %s28, 1
      %p243 = por %p241, %p242
      %p245 = scmp.ne.s32.totalorder %s228, %s244
      %p246 = scmp.eq.s32.totalorder %s28, 0
      %p247 = por %p245, %p246
      %s248 = ssub.s32 %s29, %s41
      %p249 = scmp.eq.s32.totalorder %s248, 0
      %s251 = sadd.s32 %s250, 1
      %s252 = scalar_select %p249, %s250, %s251
      %p255 = pneg %p249
      %p256 = scmp.eq.s32.totalorder %s22, 1
      %p257 = por %p255, %p256
      %p258 = scmp.ne.s32.totalorder %s250, %s253
      %p259 = scmp.eq.s32.totalorder %s22, 0
      %p260 = por %p258, %p259
      %p261 = scmp.ne.s32.totalorder %s250, %s253
      %p262 = scmp.eq.s32.totalorder %s27, 1
      %p263 = por %p261, %p262
      %p264 = scmp.ne.s32.totalorder %s253, %s254
      %p265 = scmp.eq.s32.totalorder %s27, 0
      %p266 = por %p264, %p265
      %p267 = scmp.ne.s32.totalorder %s253, %s254
      %p268 = scmp.eq.s32.totalorder %s28, 1
      %p269 = por %p267, %p268
      %p271 = scmp.ne.s32.totalorder %s254, %s270
      %p272 = scmp.eq.s32.totalorder %s28, 0
      %p273 = por %p271, %p272
      %p274 = scmp.le.s32.totalorder 1, %s22
      %p275 = scmp.lt.s32.totalorder %s22, 3
      %p276 = pnand %p274, %p275
      %p277 = pneg %p276
      // Predicated region
      $region9: #{tpu_custom_call.1} parent=5 // pred_check
        _
      $region10: #{tpu_custom_call.1} parent=5 // pred_check_branch
        %279 = sbr.rel (%p276) target = $region12
      $region11: #{tpu_custom_call.1} parent=5 // pred_region
        %s280 = ssub.s32 %s22, 1
        // Predicated region
        $region13: #{tpu_custom_call.1} parent=11 // pred_check
          %p281 = pneg %p83
        $region14: #{tpu_custom_call.1} parent=11 // pred_check_branch
          %283 = sbr.rel (%p281) target = $region16
        $region15: #{tpu_custom_call.1} parent=11 // pred_region
          _
        $region16: #{tpu_custom_call.1} parent=11 // pred_fallthru
          _
        // Predicated region
        $region17: #{tpu_custom_call.1} parent=11 // pred_check
          %p284 = pneg %p104
        $region18: #{tpu_custom_call.1} parent=11 // pred_check_branch
          %286 = sbr.rel (%p284) target = $region20
        $region19: #{tpu_custom_call.1} parent=11 // pred_region
          _
        $region20: #{tpu_custom_call.1} parent=11 // pred_fallthru
          _
        // Predicated region
        $region21: #{tpu_custom_call.1} parent=11 // pred_check
          %p287 = pneg %p125
        $region22: #{tpu_custom_call.1} parent=11 // pred_check_branch
          %289 = sbr.rel (%p287) target = $region24
        $region23: #{tpu_custom_call.1} parent=11 // pred_region
          _
        $region24: #{tpu_custom_call.1} parent=11 // pred_fallthru
          _
        // Predicated region
        $region25: #{tpu_custom_call.1} parent=11 // pred_check
          %p290 = pneg %p146
        $region26: #{tpu_custom_call.1} parent=11 // pred_check_branch
          %292 = sbr.rel (%p290) target = $region28
        $region27: #{tpu_custom_call.1} parent=11 // pred_region
          _
        $region28: #{tpu_custom_call.1} parent=11 // pred_fallthru
          _
        // Predicated region
        $region29: #{tpu_custom_call.1} parent=11 // pred_check
          %p293 = pneg %p167
        $region30: #{tpu_custom_call.1} parent=11 // pred_check_branch
          %295 = sbr.rel (%p293) target = $region32
        $region31: #{tpu_custom_call.1} parent=11 // pred_region
          _
        $region32: #{tpu_custom_call.1} parent=11 // pred_fallthru
          _
        // Predicated region
        $region33: #{tpu_custom_call.1} parent=11 // pred_check
          %p296 = pneg %p188
        $region34: #{tpu_custom_call.1} parent=11 // pred_check_branch
          %298 = sbr.rel (%p296) target = $region36
        $region35: #{tpu_custom_call.1} parent=11 // pred_region
          _
        $region36: #{tpu_custom_call.1} parent=11 // pred_fallthru
          _
      $region12: #{tpu_custom_call.1} parent=5 // pred_fallthru
        _
      %p299 = scmp.lt.s32.totalorder %s22, 2
      // Predicated region
      $region37: #{tpu_custom_call.1} parent=5 // pred_check
        %p300 = pneg %p299
      $region38: #{tpu_custom_call.1} parent=5 // pred_check_branch
        %302 = sbr.rel (%p300) target = $region40
      $region39: #{tpu_custom_call.1} parent=5 // pred_region
        // Predicated region
        $region41: #{tpu_custom_call.1} parent=39 // pred_check
          %p303 = pneg %p56
        $region42: #{tpu_custom_call.1} parent=39 // pred_check_branch
          %305 = sbr.rel (%p303) target = $region44
        $region43: #{tpu_custom_call.1} parent=39 // pred_region
          %s306 = sand.u32 %s46, 1
          %s307 = scalar_lea.sflag [#allocation5], %s306
          %s308 = sand.u32 %s46, 1
          %s309 = smul.addr %s308, 8
          %s310 = scalar_lea.vmem [#allocation4], %s309
          %s311 = smul.u32 2, %s29
          %s313 = ssub.s32 128, 128
          %314 = vsyncadd %s307, %s313
          %s315 = smul.addr %s311, 2
          %s316 = sadd.s32 %s30, %s315
          %s317 = smul.addr %s316, 64
          %s318 = scalar_lea.hbm %s0, %s317
          %s319 = sshll.u32 %s310, 4
          %s320 = int_to_ptr.vmem [resolvable:$true] %s319
          %325 = dma.hbm_to_vmem [thread:$0]  %s318, 128, %s320, %s307, 128, 64, 4
        $region44: #{tpu_custom_call.1} parent=39 // pred_fallthru
          _
      $region40: #{tpu_custom_call.1} parent=5 // pred_fallthru
        _
      %p326 = scmp.le.s32.totalorder 1, %s22
      %p327 = scmp.lt.s32.totalorder %s22, 3
      %p328 = pnand %p326, %p327
      %p329 = pneg %p328
      // Predicated region
      $region45: #{tpu_custom_call.1} parent=5 // pred_check
        _
      $region46: #{tpu_custom_call.1} parent=5 // pred_check_branch
        %331 = sbr.rel (%p328) target = $region48
      $region47: #{tpu_custom_call.1} parent=5 // pred_region
        %s332 = ssub.s32 %s22, 1
        %s333 = sand.u32 %s49, 1
        %s334 = scalar_lea.sflag [#allocation5], %s333
        %s335 = sand.u32 %s49, 1
        %s336 = smul.addr %s335, 8
        %s337 = scalar_lea.vmem [#allocation4], %s336
        // Predicated region
        $region49: #{tpu_custom_call.1} parent=47 // pred_check
          %p338 = pneg %p62
        $region50: #{tpu_custom_call.1} parent=47 // pred_check_branch
          %340 = sbr.rel (%p338) target = $region52
        $region51: #{tpu_custom_call.1} parent=47 // pred_region
          %341 = dma.done %s334, 128
        $region52: #{tpu_custom_call.1} parent=47 // pred_fallthru
          _
        %s342 = sand.u32 %s49, 1
        %s343 = scalar_lea.sflag [#allocation5], %s342
        %s344 = sand.u32 %s49, 1
        %s345 = smul.addr %s344, 8
        %s346 = scalar_lea.vmem [#allocation4], %s345
        %p347 = pneg %p62
        %p348 = pneg %p59
        %p349 = pneg %p83
        %p350 = pneg %p80
        %p351 = pneg %p104
        %p352 = pneg %p101
        %p353 = pneg %p125
        %p354 = pneg %p122
        %p355 = pneg %p146
        %p356 = pneg %p143
        %p357 = pneg %p167
        %p358 = pneg %p164
        %p359 = pneg %p188
        %p360 = pneg %p185
        %p361 = pneg %p214
        %p362 = pneg %p211
        %p363 = pneg %p240
        %p364 = pneg %p237
        %p365 = pneg %p266
        %p366 = pneg %p263
        %s367 = smul.u32 2, %s31
        %p368 = scmp.eq.s32.totalorder %s32, 0
        // Predicated region
        $region53: #{tpu_custom_call.1} parent=47 // pred_check
          %p369 = pneg %p368
        $region54: #{tpu_custom_call.1} parent=47 // pred_check_branch
          %371 = sbr.rel (%p369) target = $region56
        $region55: #{tpu_custom_call.1} parent=47 // pred_region
          %vm372 = vcmask 25600
          %373 = vst.msk [vmem:[#allocation2] sm:$0x3] %vm372, 0.0
        $region56: #{tpu_custom_call.1} parent=47 // pred_fallthru
          _
        %v374 = vld [vmem:[#allocation2] sm:$0x3]
        %v375 = vld [vmem:[%s337] sm:$0xf]
        %v376 = vld [vmem:[%s337 + $0x4] sm:$0xf]
        %vm377 = vcmask 1043456
        %v378 = vsel %vm377, %v375, 0.0
        %379 = vadd.xlane.f32.xlu0 %v378
        %v380 = vpop.xlane.xlu0 %379
        %v381 = vsel %vm377, %v376, 0.0
        %382 = vadd.xlane.f32.xlu0 %v381
        %v383 = vpop.xlane.xlu0 %382
        %v386 = vlaneseq
        %v387 = vand.u32 %v386, 127
        %v388 = vlaneseq
        %v389 = vshrl.u32 %v388, 7
        %v390 = vsub.s32 %v387, %v389
        %v391 = vrot.slane %v380, %v390
        %v392 = vlaneseq
        %v393 = vshrl.u32 %v392, 7
        %v394 = vsub.s32 %v387, %v393
        %v395 = vrot.slane %v383, %v394
        %vm396 = vcmask 1041409
        %v397 = vsel %vm396, %v395, %v391
        %v399 = vadd.f32 %v374, %v397
        %vm400 = vcmask 25600
        %401 = vst.msk [vmem:[#allocation2] sm:$0x3] %vm400, %v399
        %p402 = scmp.eq.s32.totalorder %s32, 1
        // Predicated region
        $region57: #{tpu_custom_call.1} parent=47 // pred_check
          %p403 = pneg %p402
        $region58: #{tpu_custom_call.1} parent=47 // pred_check_branch
          %405 = sbr.rel (%p403) target = $region60
        $region59: #{tpu_custom_call.1} parent=47 // pred_region
          %v406 = vld [vmem:[#allocation2] sm:$0x3]
          %v407 = vmul.f32 %v406, 0.00390625
          %v408 = vld [vmem:[%s3] sm:$0x1]
          %v410 = vlaneseq
          %v411 = vshrl.u32 %v410, 7
          %v412 = vsub.s32 0, %v411
          %v413 = vrot.slane %v408, %v412
          %v415 = vadd.f32 %v413, 0.0
          %v416 = vld [vmem:[%s1] sm:$0x1]
          %v418 = vlaneseq
          %v419 = vshrl.u32 %v418, 7
          %v420 = vsub.s32 0, %v419
          %v421 = vrot.slane %v416, %v420
          %v423 = vmul.f32 %v407, %v421
          %v424 = vsel %vm400, %v423, 0.0
          %425 = vadd.xlane.f32.xlu0 %v424
          %v426 = vpop.xlane.xlu0 %425
          %v427 = vmax.f32 %v426, 0.0
          %v428 = vld [vmem:[%s2] sm:$0x1]
          %v430 = vlaneseq
          %v431 = vshrl.u32 %v430, 7
          %v432 = vsub.s32 0, %v431
          %v433 = vrot.slane %v428, %v432
          %v435 = vmul.f32 %v427, %v433
          %v436 = vadd.f32 %v415, %v435
          %s437 = sld [smem:[#allocation3]]
          %v438 = vstv %s437
          %v439 = vmul.f32 %v436, %v438
          %vm440 = vcmask 9216
          %v441 = vsel %vm440, %v439, -inf
          %442 = vmax.xlane.f32.xlu0 %v441
          %v443 = vpop.xlane.xlu0 %442
          %v444 = vsub.f32 %v439, %v443
          %v445 = vmul.f32 %v444, 1.442695
          %v446 = vpow.pop %v445
          %v447 = vsel %vm440, %v446, 0.0
          %448 = vadd.xlane.f32.xlu0 %v447
          %v449 = vpop.xlane.xlu0 %448
          %v450 = vrcp.pop %v449
          %v451 = vmul.f32 %v446, %v450
          %452 = vst.msk [vmem:[#allocation7] sm:$0x3] %vm440, %v451
          %v453 = vld [vmem:[%s4] sm:$0x1]
          %455 = vset.pattern.permute.xlu0 0
          %456 = vperm.xlu0 %455, %v451
          %v457 = vpop.permute.xlu0 %456
          %v459 = vlaneseq
          %v460 = vshrl.u32 %v459, 7
          %v461 = vsub.s32 0, %v460
          %v462 = vrot.slane %v453, %v461
          %v463 = vmul.f32 %v457, %v462
          %v464 = vadd.f32 %v463, 0.0
          %v465 = vld [vmem:[%s5] sm:$0x1]
          %v466 = vlaneseq
          %v467 = vshrl.u32 %v466, 7
          %v468 = vsub.s32 0, %v467
          %v469 = vrot.slane %v465, %v468
          %v470 = vmul.f32 %v457, %v469
          %v471 = vadd.f32 %v470, 0.0
          %v472 = vld [vmem:[%s4 + $0x1] sm:$0x1]
          %473 = vset.pattern.permute.xlu0 1
          %474 = vperm.xlu0 %473, %v451
          %v475 = vpop.permute.xlu0 %474
          %v477 = vlaneseq
          %v478 = vshrl.u32 %v477, 7
          %v479 = vsub.s32 0, %v478
          %v480 = vrot.slane %v472, %v479
          %v481 = vmul.f32 %v475, %v480
          %v482 = vadd.f32 %v464, %v481
          %v483 = vld [vmem:[%s5 + $0x1] sm:$0x1]
          %v484 = vlaneseq
          %v485 = vshrl.u32 %v484, 7
          %v486 = vsub.s32 0, %v485
          %v487 = vrot.slane %v483, %v486
          %v488 = vmul.f32 %v475, %v487
          %v489 = vadd.f32 %v471, %v488
          %vm490 = vcmask 287744
          %491 = vst.msk [vmem:[#allocation8] sm:$0x3] %vm490, %v482
          %492 = vst.msk [vmem:[#allocation10] sm:$0x3] %vm400, %v489
        $region60: #{tpu_custom_call.1} parent=47 // pred_fallthru
          _
        // Predicated region
        $region61: #{tpu_custom_call.1} parent=47 // pred_check
          %p493 = pneg %p211
        $region62: #{tpu_custom_call.1} parent=47 // pred_check_branch
          %495 = sbr.rel (%p493) target = $region64
        $region63: #{tpu_custom_call.1} parent=47 // pred_region
          %s497 = ssub.s32 32, 32
          %498 = vsyncadd [#allocation6], %s497
          %s499 = smul.addr %s31, 32
          %s500 = scalar_lea.hbm %s7, %s499
          %s502 = sshll.u32 [#allocation7], 4
          %s503 = int_to_ptr.vmem [resolvable:$true] %s502
          %505 = dma.vmem_to_hbm [thread:$0]  %s503, 32, %s500, [#allocation6]
        $region64: #{tpu_custom_call.1} parent=47 // pred_fallthru
          _
        // Predicated region
        $region65: #{tpu_custom_call.1} parent=47 // pred_check
          %p506 = pneg %p237
        $region66: #{tpu_custom_call.1} parent=47 // pred_check_branch
          %508 = sbr.rel (%p506) target = $region68
        $region67: #{tpu_custom_call.1} parent=47 // pred_region
          %s510 = ssub.s32 32, 32
          %511 = vsyncadd [#allocation9], %s510
          %s512 = smul.addr %s31, 32
          %s513 = scalar_lea.hbm %s8, %s512
          %s515 = sshll.u32 [#allocation8], 4
          %s516 = int_to_ptr.vmem [resolvable:$true] %s515
          %518 = dma.vmem_to_hbm [thread:$0]  %s516, 32, %s513, [#allocation9]
        $region68: #{tpu_custom_call.1} parent=47 // pred_fallthru
          _
        // Predicated region
        $region69: #{tpu_custom_call.1} parent=47 // pred_check
          %p519 = pneg %p263
        $region70: #{tpu_custom_call.1} parent=47 // pred_check_branch
          %521 = sbr.rel (%p519) target = $region72
        $region71: #{tpu_custom_call.1} parent=47 // pred_region
          %s523 = ssub.s32 32, 32
          %524 = vsyncadd [#allocation9], %s523
          %s525 = smul.addr %s31, 32
          %s526 = scalar_lea.hbm %s9, %s525
          %s528 = sshll.u32 [#allocation10], 4
          %s529 = int_to_ptr.vmem [resolvable:$true] %s528
          %531 = dma.vmem_to_hbm [thread:$0]  %s529, 32, %s526, [#allocation9]
        $region72: #{tpu_custom_call.1} parent=47 // pred_fallthru
          _
        // Predicated region
        $region73: #{tpu_custom_call.1} parent=47 // pred_check
          %p532 = pneg %p211
        $region74: #{tpu_custom_call.1} parent=47 // pred_check_branch
          %534 = sbr.rel (%p532) target = $region76
        $region75: #{tpu_custom_call.1} parent=47 // pred_region
          %535 = dma.done [#allocation6], 32
        $region76: #{tpu_custom_call.1} parent=47 // pred_fallthru
          _
        // Predicated region
        $region77: #{tpu_custom_call.1} parent=47 // pred_check
          %p536 = pneg %p237
        $region78: #{tpu_custom_call.1} parent=47 // pred_check_branch
          %538 = sbr.rel (%p536) target = $region80
        $region79: #{tpu_custom_call.1} parent=47 // pred_region
          %539 = dma.done [#allocation9], 32
        $region80: #{tpu_custom_call.1} parent=47 // pred_fallthru
          _
        // Predicated region
        $region81: #{tpu_custom_call.1} parent=47 // pred_check
          %p540 = pneg %p263
        $region82: #{tpu_custom_call.1} parent=47 // pred_check_branch
          %542 = sbr.rel (%p540) target = $region84
        $region83: #{tpu_custom_call.1} parent=47 // pred_region
          %543 = dma.done [#allocation9], 32
        $region84: #{tpu_custom_call.1} parent=47 // pred_fallthru
          _
      $region48: #{tpu_custom_call.1} parent=5 // pred_fallthru
        _
      %p544 = scmp.le.s32.totalorder 2, %s22
      // Predicated region
      $region85: #{tpu_custom_call.1} parent=5 // pred_check
        %p545 = pneg %p544
      $region86: #{tpu_custom_call.1} parent=5 // pred_check_branch
        %547 = sbr.rel (%p545) target = $region88
      $region87: #{tpu_custom_call.1} parent=5 // pred_region
        %s548 = ssub.s32 %s22, 2
      $region88: #{tpu_custom_call.1} parent=5 // pred_fallthru
        _
    $region6: #{tpu_custom_call.1} parent=1 // loop_footer
      %s26 = sadd.s32 1, %s22
    $region7: #{tpu_custom_call.1} parent=1 // loop_footer_branch
      %21 = sbr.rel target = $region3
    $region8: #{tpu_custom_call.1} parent=1 // loop_exit
      _
    %549 = vsyncpa [#allocation5], 1
    %s550 = scalar_lea.sflag [#allocation5], 1
    %551 = vsyncpa %s550, 1
    %552 = vsyncpa [#allocation6], 1
    %s553 = scalar_lea.sflag [#allocation6], 1
    %554 = vsyncpa %s553, 1
    %555 = vsyncpa [#allocation9], 1

</llo_original>
